<compile_context>
chip_gen: v5e
topology: v5e:2x2
jax: 0.10.0
libtpu: 0.0.40
codegen_flags: <defaults>
</compile_context>

<pallas_src>
import functools

import jax
import jax.numpy as jnp
from jax.experimental import pallas as pl
from jax.experimental.pallas import tpu as pltpu


def _dec_mlp_kernel(x_ref, w1_ref, b1_ref, w2_ref, b2_ref, o_ref):
    # fc1 (MXU, bf16 in / f32 accumulate) + bias + ReLU, fused with fc2 + bias.
    x = x_ref[...].astype(w1_ref.dtype)
    h = jnp.dot(x, w1_ref[...], preferred_element_type=jnp.float32)
    h = jnp.maximum(h + b1_ref[...], 0.0)
    # TODO(synk): nn.Dropout(mlp_droprate) is an inference-mode identity here.
    y = jnp.dot(h.astype(w2_ref.dtype), w2_ref[...],
                preferred_element_type=jnp.float32)
    o_ref[...] = (y + b2_ref[...]).astype(o_ref.dtype)


def _vmem_limit_bytes():
    """Generation-aware scoped-VMEM limit (v7x: 64 MiB/TC, v5e/v6e: 128 MiB)."""
    phys = 128 * 1024 * 1024
    try:
        phys = int(pltpu.get_tpu_info().vmem_capacity_bytes)
    except Exception:
        pass
    # ~25% headroom for compiler-internal scratch; never ask for more than 100 MiB.
    return max(32 * 1024 * 1024, min(int(phys * 0.75), 100 * 1024 * 1024))


def _choose_tm(m, block_m):
    """Row-tile size: multiple of 16 sublanes (bf16-safe), <= m, big tiles."""
    if m <= 16:
        # full-array block (allowed when block dim == array dim) or one 8-row granule
        return m if (m < 8 or m % 8 == 0) else 8
    tm = min(block_m, (m // 16) * 16)
    # v7x megacore: keep >= 2 row tiles when rows are plentiful; never shrink
    # below 256 rows (single-TC v5e/v6e prefer big tiles to amortize step cost).
    if tm >= 512 and pl.cdiv(m, tm) < 2:
        tm = max(256, ((tm // 2) // 16) * 16)
    return tm


def prepare_params(params, *, compute_dtype=jnp.bfloat16):
    """One-time prep: cast weights to the MXU dtype, lane-pad fc2 to 128 cols,
    reshape biases to (1, N) f32.  Do this once, not on every forward call."""
    w1 = params["fc1_w"]                       # (d_model, d_model)
    w2 = params["fc2_w"]                       # (d_model, out_fea)
    d_model = w1.shape[0]
    n_out = w2.shape[1]
    n_pad = pl.cdiv(max(n_out, 1), 128) * 128  # lane-dense output width

    w2p = jnp.zeros((d_model, n_pad), compute_dtype).at[:, :n_out].set(
        w2.astype(compute_dtype))
    b2p = jnp.zeros((1, n_pad), jnp.float32).at[:, :n_out].set(
        params["fc2_b"].reshape(1, n_out).astype(jnp.float32))
    return dict(
        fc1_w=w1.astype(compute_dtype),
        fc1_b=params["fc1_b"].reshape(1, d_model).astype(jnp.float32),
        fc2_w=w2p,
        fc2_b=b2p,
    )


def dec_mlp_forward(prep, x, *, out_fea, block_m=1024, single_buffer_weights=True):
    """x: (..., d_model) -> (..., out_fea). Matches dec_mlp.forward (inference)."""
    w1, b1, w2, b2 = prep["fc1_w"], prep["fc1_b"], prep["fc2_w"], prep["fc2_b"]
    d_model = w1.shape[0]
    n_pad = w2.shape[1]

    lead_shape = x.shape[:-1]
    x2 = x.reshape(-1, d_model)
    m = x2.shape[0]
    tm = _choose_tm(m, block_m)
    grid_m = pl.cdiv(m, tm)

    def w_spec(shape):
        # Grid-invariant operand: single buffer (no point double-buffering a
        # block whose index_map never changes).
        if single_buffer_weights:
            return pl.BlockSpec(shape, lambda i: (0, 0),
                                pipeline_mode=pl.Buffered(1))
        return pl.BlockSpec(shape, lambda i: (0, 0))

    out = pl.pallas_call(
        _dec_mlp_kernel,
        out_shape=jax.ShapeDtypeStruct((m, n_pad), x.dtype),
        grid_spec=pltpu.PrefetchScalarGridSpec(
            num_scalar_prefetch=0,
            grid=(grid_m,),
            in_specs=[
                pl.BlockSpec((tm, d_model), lambda i: (i, 0)),   # x row tile
                w_spec((d_model, d_model)),                      # fc1 weight (resident)
                w_spec((1, d_model)),                            # fc1 bias
                w_spec((d_model, n_pad)),                        # fc2 weight (lane-padded)
                w_spec((1, n_pad)),                              # fc2 bias
            ],
            out_specs=pl.BlockSpec((tm, n_pad), lambda i: (i, 0)),
        ),
        compiler_params=pltpu.CompilerParams(
            dimension_semantics=("parallel",),
            vmem_limit_bytes=_vmem_limit_bytes(),
        ),
    )(x2, w1, b1, w2, b2)

    return out[:, :out_fea].reshape(*lead_shape, out_fea)


def init_params(key, *, d_model, out_fea):
    k1, k2, k3, k4 = jax.random.split(key, 4)
    scale = 0.02
    return dict(
        fc1_w=(scale * jax.random.normal(k1, (d_model, d_model))).astype(jnp.float32),
        fc1_b=(scale * jax.random.normal(k2, (d_model,))).astype(jnp.float32),
        fc2_w=(scale * jax.random.normal(k3, (d_model, out_fea))).astype(jnp.float32),
        fc2_b=(scale * jax.random.normal(k4, (out_fea,))).astype(jnp.float32),
    )


if __name__ == "__main__":
    key = jax.random.PRNGKey(0)
    k_param, k_x = jax.random.split(key)

    batch, seqlen, d_model, out_fea = 2, 8, 256, 1
    params = init_params(k_param, d_model=d_model, out_fea=out_fea)
    x = jax.random.normal(k_x, (batch, seqlen, d_model), jnp.float32)

    prep = prepare_params(params)   # one-time: bf16 weights + lane-padded fc2

    fwd = jax.jit(functools.partial(dec_mlp_forward, out_fea=out_fea))
    try:
        y = fwd(prep, x)
        jax.block_until_ready(y)
    except Exception:
        # Fallback if this jax build rejects Buffered(1) single-buffering.
        fwd = jax.jit(functools.partial(dec_mlp_forward, out_fea=out_fea,
                                        single_buffer_weights=False))
        y = fwd(prep, x)
        jax.block_until_ready(y)

    assert y.shape == (batch, seqlen, out_fea), y.shape
    assert jnp.all(jnp.isfinite(y))

    # Reference mirroring the kernel's numerics (bf16 MXU feed, f32 accumulate).
    xb = x.astype(jnp.bfloat16)
    h_ref = jnp.maximum(
        jnp.dot(xb, prep["fc1_w"], preferred_element_type=jnp.float32)
        + prep["fc1_b"], 0.0)
    y_ref = (jnp.dot(h_ref.astype(jnp.bfloat16), prep["fc2_w"],
                     preferred_element_type=jnp.float32)
             + prep["fc2_b"])[..., :out_fea]
    assert jnp.allclose(y, y_ref, atol=2e-3, rtol=2e-3), float(
        jnp.max(jnp.abs(y - y_ref)))

    # Coarse check against full-f32 PyTorch semantics (bf16 weights => looser tol).
    h32 = jnp.maximum(x @ params["fc1_w"] + params["fc1_b"], 0.0)
    y32 = h32 @ params["fc2_w"] + params["fc2_b"]
    assert jnp.allclose(y, y32, atol=5e-2, rtol=5e-2), float(
        jnp.max(jnp.abs(y - y32)))

    print("KERNEL_OK")
</pallas_src>

<mosaic_0001>
module attributes {stable_mosaic.version = 11 : i64} {
  func.func @_dec_mlp_kernel(%arg0: i32, %arg1: memref<16x256xf32, #tpu.memory_space<vmem>>, %arg2: memref<256x256xbf16, #tpu.memory_space<vmem>>, %arg3: memref<1x256xf32, #tpu.memory_space<vmem>>, %arg4: memref<256x128xbf16, #tpu.memory_space<vmem>>, %arg5: memref<1x128xf32, #tpu.memory_space<vmem>>, %arg6: memref<16x128xf32, #tpu.memory_space<vmem>>) attributes {dimension_semantics = [#tpu.dimension_semantics<parallel>], iteration_bounds = array<i64: 1>, scalar_prefetch = 0 : i64, scratch_operands = 0 : i64, tpu.core_type = #tpu.core_type<tc>, window_params = [{transform_indices = @transform_0, window_bounds = array<i64: 16, 256>}, {pipeline_mode = #tpu.pipeline_mode<synchronous>, transform_indices = @transform_1, window_bounds = array<i64: 256, 256>}, {pipeline_mode = #tpu.pipeline_mode<synchronous>, transform_indices = @transform_2, window_bounds = array<i64: 1, 256>}, {pipeline_mode = #tpu.pipeline_mode<synchronous>, transform_indices = @transform_3, window_bounds = array<i64: 256, 128>}, {pipeline_mode = #tpu.pipeline_mode<synchronous>, transform_indices = @transform_4, window_bounds = array<i64: 1, 128>}, {transform_indices = @transform_5, window_bounds = array<i64: 16, 128>}]} {
    %c0 = arith.constant 0 : index
    %c0_0 = arith.constant 0 : index
    %0 = vector.load %arg1[%c0, %c0_0] : memref<16x256xf32, #tpu.memory_space<vmem>>, vector<16x256xf32>
    %1 = arith.truncf %0 : vector<16x256xf32> to vector<16x256xbf16>
    %c0_1 = arith.constant 0 : index
    %c0_2 = arith.constant 0 : index
    %2 = vector.load %arg2[%c0_1, %c0_2] : memref<256x256xbf16, #tpu.memory_space<vmem>>, vector<256x256xbf16>
    %cst = arith.constant dense<0.000000e+00> : vector<16x256xf32>
    %3 = tpu.matmul %1, %2, %cst {dimension_numbers = #tpu.dot_dimension_numbers<[1], [0], [0], [1], [0, 0, 1, 1], [], []>} : vector<16x256xbf16>, vector<256x256xbf16>, vector<16x256xf32> -> vector<16x256xf32>
    %c0_3 = arith.constant 0 : index
    %c0_4 = arith.constant 0 : index
    %4 = vector.load %arg3[%c0_3, %c0_4] : memref<1x256xf32, #tpu.memory_space<vmem>>, vector<1x256xf32>
    %5 = vector.broadcast %4 : vector<1x256xf32> to vector<16x256xf32>
    %6 = arith.addf %3, %5 : vector<16x256xf32>
    %cst_5 = arith.constant 0.000000e+00 : f32
    %7 = vector.broadcast %cst_5 : f32 to vector<16x256xf32>
    %8 = arith.maximumf %6, %7 : vector<16x256xf32>
    %9 = arith.truncf %8 : vector<16x256xf32> to vector<16x256xbf16>
    %c0_6 = arith.constant 0 : index
    %c0_7 = arith.constant 0 : index
    %10 = vector.load %arg4[%c0_6, %c0_7] : memref<256x128xbf16, #tpu.memory_space<vmem>>, vector<256x128xbf16>
    %cst_8 = arith.constant dense<0.000000e+00> : vector<16x128xf32>
    %11 = tpu.matmul %9, %10, %cst_8 {dimension_numbers = #tpu.dot_dimension_numbers<[1], [0], [0], [1], [0, 0, 1, 1], [], []>} : vector<16x256xbf16>, vector<256x128xbf16>, vector<16x128xf32> -> vector<16x128xf32>
    %c0_9 = arith.constant 0 : index
    %c0_10 = arith.constant 0 : index
    %12 = vector.load %arg5[%c0_9, %c0_10] : memref<1x128xf32, #tpu.memory_space<vmem>>, vector<1x128xf32>
    %13 = vector.broadcast %12 : vector<1x128xf32> to vector<16x128xf32>
    %14 = arith.addf %11, %13 : vector<16x128xf32>
    %c0_11 = arith.constant 0 : index
    %c0_12 = arith.constant 0 : index
    %15 = vector.load %arg6[%c0_11, %c0_12] : memref<16x128xf32, #tpu.memory_space<vmem>>, vector<16x128xf32>
    tpu.vector_store %arg6[%c0_11, %c0_12], %14 {strides = array<i32>} : memref<16x128xf32, #tpu.memory_space<vmem>>, vector<16x128xf32>,
    return
  }
  func.func @transform_0(%arg0: i32) -> (i32, i32) {
    %c0_i32 = arith.constant 0 : i32
    %c0_i32_0 = arith.constant 0 : i32
    return %arg0, %c0_i32 : i32, i32
  }
  func.func @transform_1(%arg0: i32) -> (i32, i32) {
    %c0_i32 = arith.constant 0 : i32
    %c0_i32_0 = arith.constant 0 : i32
    %c0_i32_1 = arith.constant 0 : i32
    return %c0_i32, %c0_i32_0 : i32, i32
  }
  func.func @transform_2(%arg0: i32) -> (i32, i32) {
    %c0_i32 = arith.constant 0 : i32
    %c0_i32_0 = arith.constant 0 : i32
    %c0_i32_1 = arith.constant 0 : i32
    return %c0_i32, %c0_i32_0 : i32, i32
  }
  func.func @transform_3(%arg0: i32) -> (i32, i32) {
    %c0_i32 = arith.constant 0 : i32
    %c0_i32_0 = arith.constant 0 : i32
    %c0_i32_1 = arith.constant 0 : i32
    return %c0_i32, %c0_i32_0 : i32, i32
  }
  func.func @transform_4(%arg0: i32) -> (i32, i32) {
    %c0_i32 = arith.constant 0 : i32
    %c0_i32_0 = arith.constant 0 : i32
    %c0_i32_1 = arith.constant 0 : i32
    return %c0_i32, %c0_i32_0 : i32, i32
  }
  func.func @transform_5(%arg0: i32) -> (i32, i32) {
    %c0_i32 = arith.constant 0 : i32
    %c0_i32_0 = arith.constant 0 : i32
    return %arg0, %c0_i32 : i32, i32
  }
}

module attributes {stable_mosaic.version = 11 : i64} {
  func.func @_dec_mlp_kernel(%arg0: i32, %arg1: memref<16x256xf32, #tpu.memory_space<vmem>>, %arg2: memref<256x256xbf16, #tpu.memory_space<vmem>>, %arg3: memref<1x256xf32, #tpu.memory_space<vmem>>, %arg4: memref<256x128xbf16, #tpu.memory_space<vmem>>, %arg5: memref<1x128xf32, #tpu.memory_space<vmem>>, %arg6: memref<16x128xf32, #tpu.memory_space<vmem>>) attributes {dimension_semantics = [#tpu.dimension_semantics<parallel>], iteration_bounds = array<i64: 1>, scalar_prefetch = 0 : i64, scratch_operands = 0 : i64, tpu.core_type = #tpu.core_type<tc>, window_params = [{transform_indices = @transform_0, window_bounds = array<i64: 16, 256>}, {pipeline_mode = #tpu.pipeline_mode<synchronous>, transform_indices = @transform_1, window_bounds = array<i64: 256, 256>}, {pipeline_mode = #tpu.pipeline_mode<synchronous>, transform_indices = @transform_2, window_bounds = array<i64: 1, 256>}, {pipeline_mode = #tpu.pipeline_mode<synchronous>, transform_indices = @transform_3, window_bounds = array<i64: 256, 128>}, {pipeline_mode = #tpu.pipeline_mode<synchronous>, transform_indices = @transform_4, window_bounds = array<i64: 1, 128>}, {transform_indices = @transform_5, window_bounds = array<i64: 16, 128>}]} {
    %c0 = arith.constant 0 : index
    %c0_0 = arith.constant 0 : index
    %0 = vector.load %arg1[%c0, %c0_0] : memref<16x256xf32, #tpu.memory_space<vmem>>, vector<16x256xf32>
    %1 = arith.truncf %0 : vector<16x256xf32> to vector<16x256xbf16>
    %c0_1 = arith.constant 0 : index
    %c0_2 = arith.constant 0 : index
    %2 = vector.load %arg2[%c0_1, %c0_2] : memref<256x256xbf16, #tpu.memory_space<vmem>>, vector<256x256xbf16>
    %cst = arith.constant dense<0.000000e+00> : vector<16x256xf32>
    %3 = tpu.matmul %1, %2, %cst {dimension_numbers = #tpu.dot_dimension_numbers<[1], [0], [0], [1], [0, 0, 1, 1], [], []>} : vector<16x256xbf16>, vector<256x256xbf16>, vector<16x256xf32> -> vector<16x256xf32>
    %c0_3 = arith.constant 0 : index
    %c0_4 = arith.constant 0 : index
    %4 = vector.load %arg3[%c0_3, %c0_4] : memref<1x256xf32, #tpu.memory_space<vmem>>, vector<1x256xf32>
    %5 = vector.broadcast %4 : vector<1x256xf32> to vector<16x256xf32>
    %6 = arith.addf %3, %5 : vector<16x256xf32>
    %cst_5 = arith.constant 0.000000e+00 : f32
    %7 = vector.broadcast %cst_5 : f32 to vector<16x256xf32>
    %8 = arith.maximumf %6, %7 : vector<16x256xf32>
    %9 = arith.truncf %8 : vector<16x256xf32> to vector<16x256xbf16>
    %c0_6 = arith.constant 0 : index
    %c0_7 = arith.constant 0 : index
    %10 = vector.load %arg4[%c0_6, %c0_7] : memref<256x128xbf16, #tpu.memory_space<vmem>>, vector<256x128xbf16>
    %cst_8 = arith.constant dense<0.000000e+00> : vector<16x128xf32>
    %11 = tpu.matmul %9, %10, %cst_8 {dimension_numbers = #tpu.dot_dimension_numbers<[1], [0], [0], [1], [0, 0, 1, 1], [], []>} : vector<16x256xbf16>, vector<256x128xbf16>, vector<16x128xf32> -> vector<16x128xf32>
    %c0_9 = arith.constant 0 : index
    %c0_10 = arith.constant 0 : index
    %12 = vector.load %arg5[%c0_9, %c0_10] : memref<1x128xf32, #tpu.memory_space<vmem>>, vector<1x128xf32>
    %13 = vector.broadcast %12 : vector<1x128xf32> to vector<16x128xf32>
    %14 = arith.addf %11, %13 : vector<16x128xf32>
    %c0_11 = arith.constant 0 : index
    %c0_12 = arith.constant 0 : index
    %15 = vector.load %arg6[%c0_11, %c0_12] : memref<16x128xf32, #tpu.memory_space<vmem>>, vector<16x128xf32>
    tpu.vector_store %arg6[%c0_11, %c0_12], %14 {strides = array<i32>} : memref<16x128xf32, #tpu.memory_space<vmem>>, vector<16x128xf32>,
    return
  }
  func.func @transform_0(%arg0: i32) -> (i32, i32) {
    %c0_i32 = arith.constant 0 : i32
    %c0_i32_0 = arith.constant 0 : i32
    return %arg0, %c0_i32 : i32, i32
  }
  func.func @transform_1(%arg0: i32) -> (i32, i32) {
    %c0_i32 = arith.constant 0 : i32
    %c0_i32_0 = arith.constant 0 : i32
    %c0_i32_1 = arith.constant 0 : i32
    return %c0_i32, %c0_i32_0 : i32, i32
  }
  func.func @transform_2(%arg0: i32) -> (i32, i32) {
    %c0_i32 = arith.constant 0 : i32
    %c0_i32_0 = arith.constant 0 : i32
    %c0_i32_1 = arith.constant 0 : i32
    return %c0_i32, %c0_i32_0 : i32, i32
  }
  func.func @transform_3(%arg0: i32) -> (i32, i32) {
    %c0_i32 = arith.constant 0 : i32
    %c0_i32_0 = arith.constant 0 : i32
    %c0_i32_1 = arith.constant 0 : i32
    return %c0_i32, %c0_i32_0 : i32, i32
  }
  func.func @transform_4(%arg0: i32) -> (i32, i32) {
    %c0_i32 = arith.constant 0 : i32
    %c0_i32_0 = arith.constant 0 : i32
    %c0_i32_1 = arith.constant 0 : i32
    return %c0_i32, %c0_i32_0 : i32, i32
  }
  func.func @transform_5(%arg0: i32) -> (i32, i32) {
    %c0_i32 = arith.constant 0 : i32
    %c0_i32_0 = arith.constant 0 : i32
    return %arg0, %c0_i32 : i32, i32
  }
}

</mosaic_0001>

<llo_original>
// kernel: dec_mlp_forward.1
$region0: #{dec_mlp_forward.1}
  #allocation0 [shape = 'u32[]', space=smem, size = 0x4, offset = 0x4, fixed_abs, tag = 'smem constant byte address 0x4 - core index']
  #allocation1 [shape = 'u32[72,128]{1,0:T(1,128)}', space=vmem, size = 0x9000, scoped, tag = 'internal scratch']
  %s0 = inlined_call_operand.hbm [shape: f32[16,256], index: 0, kind: input, shape index: {}]
  %s1 = inlined_call_operand.hbm [shape: bf16[256,256], index: 1, kind: input, shape index: {}]
  %s2 = inlined_call_operand.hbm [shape: f32[1,256], index: 2, kind: input, shape index: {}]
  %s3 = inlined_call_operand.hbm [shape: bf16[256,128], index: 3, kind: input, shape index: {}]
  %s4 = inlined_call_operand.vmem [shape: f32[1,128], index: 4, kind: input, shape index: {}]
  %s5 = inlined_call_operand.vmem [shape: f32[16,128], index: 5, kind: output, shape index: {}]
  %s6 = sld [smem:[#allocation0]]
  $region46: #{dec_mlp_forward.1} parent=0
    _
  %s8 = ssub.s32 1, %s6
  %s9 = scalar_select 0, %s8, %s6
  $region1: #{dec_mlp_forward.1} parent=0
    #allocation2 [shape = 'u8[16384]{0}', space=vmem, size = 0x4000, scoped, tag = 'input window, operand 0, single buffered']
    #allocation3 [shape = 's32[1]{0}', space=sflag, size = 0x4, scoped, tag = 'scoped memory for dec_mlp_forward.1']
    #allocation4 [shape = 'u8[131072]{0}', space=vmem, size = 0x20000, scoped, tag = 'input window, operand 1, single buffered']
    #allocation5 [shape = 's32[1]{0}', space=sflag, size = 0x4, scoped, tag = 'scoped memory for dec_mlp_forward.1']
    #allocation6 [shape = 'u8[1024]{0}', space=vmem, size = 0x400, scoped, tag = 'input window, operand 2, single buffered']
    #allocation7 [shape = 'u8[65536]{0}', space=vmem, size = 0x10000, scoped, tag = 'input window, operand 3, single buffered']
    #allocation8 [shape = 's32[1]{0}', space=sflag, size = 0x4, scoped, tag = 'scoped memory for dec_mlp_forward.1']
    %10 = vsyncpa [#allocation3], 0
    %11 = vsyncpa [#allocation5], 0
    %12 = vsyncpa [#allocation8], 0
    // Predicated region
    $region2: #{dec_mlp_forward.1} parent=1 // pred_check
      _
    $region3: #{dec_mlp_forward.1} parent=1 // pred_check_branch
      %14 = sbr.rel (0) target = $region5
    $region4: #{dec_mlp_forward.1} parent=1 // pred_region
      %16 = vsyncadd [#allocation3], 0
      %s17 = sshll.u32 %s0, 4
      %s18 = int_to_ptr.hbm [resolvable:$true] %s17
      %s19 = sshll.u32 [#allocation2], 4
      %s20 = int_to_ptr.vmem [resolvable:$true] %s19
      %25 = dma.hbm_to_vmem [thread:$0]  %s18, 512, %s20, [#allocation3], 256, 256, 16
    $region5: #{dec_mlp_forward.1} parent=1 // pred_fallthru
      _
    // Predicated region
    $region6: #{dec_mlp_forward.1} parent=1 // pred_check
      _
    $region7: #{dec_mlp_forward.1} parent=1 // pred_check_branch
      %27 = sbr.rel (0) target = $region9
    $region8: #{dec_mlp_forward.1} parent=1 // pred_region
      %29 = vsyncadd [#allocation5], 0
      %s30 = sshll.u32 %s1, 4
      %s31 = int_to_ptr.hbm [resolvable:$true] %s30
      %s32 = sshll.u32 [#allocation4], 4
      %s33 = int_to_ptr.vmem [resolvable:$true] %s32
      %38 = dma.hbm_to_vmem [thread:$0]  %s31, 4096, %s33, [#allocation5], 128, 128, 8
    $region9: #{dec_mlp_forward.1} parent=1 // pred_fallthru
      _
    // Predicated region
    $region10: #{dec_mlp_forward.1} parent=1 // pred_check
      _
    $region11: #{dec_mlp_forward.1} parent=1 // pred_check_branch
      %40 = sbr.rel (0) target = $region13
    $region12: #{dec_mlp_forward.1} parent=1 // pred_region
      %42 = vsyncadd [#allocation5], 0
      %s44 = sshll.u32 %s2, 4
      %s45 = int_to_ptr.hbm [resolvable:$true] %s44
      %s46 = sshll.u32 [#allocation6], 4
      %s47 = int_to_ptr.vmem [resolvable:$true] %s46
      %49 = dma.hbm_to_vmem [thread:$0]  %s45, 32, %s47, [#allocation5]
    $region13: #{dec_mlp_forward.1} parent=1 // pred_fallthru
      _
    // Predicated region
    $region14: #{dec_mlp_forward.1} parent=1 // pred_check
      _
    $region15: #{dec_mlp_forward.1} parent=1 // pred_check_branch
      %51 = sbr.rel (0) target = $region17
    $region16: #{dec_mlp_forward.1} parent=1 // pred_region
      %53 = vsyncadd [#allocation8], 0
      %s54 = sshll.u32 %s3, 4
      %s55 = int_to_ptr.hbm [resolvable:$true] %s54
      %s56 = sshll.u32 [#allocation7], 4
      %s57 = int_to_ptr.vmem [resolvable:$true] %s56
      %62 = dma.hbm_to_vmem [thread:$0]  %s55, 2048, %s57, [#allocation8], 64, 64, 4
    $region17: #{dec_mlp_forward.1} parent=1 // pred_fallthru
      _
    // Predicated region
    $region18: #{dec_mlp_forward.1} parent=1 // pred_check
      _
    $region19: #{dec_mlp_forward.1} parent=1 // pred_check_branch
      %64 = sbr.rel (0) target = $region21
    $region20: #{dec_mlp_forward.1} parent=1 // pred_region
      _
    $region21: #{dec_mlp_forward.1} parent=1 // pred_fallthru
      _
    // Predicated region
    $region22: #{dec_mlp_forward.1} parent=1 // pred_check
      _
    $region23: #{dec_mlp_forward.1} parent=1 // pred_check_branch
      %66 = sbr.rel (0) target = $region25
    $region24: #{dec_mlp_forward.1} parent=1 // pred_region
      %68 = dma.done [#allocation3], 512
    $region25: #{dec_mlp_forward.1} parent=1 // pred_fallthru
      _
    // Predicated region
    $region26: #{dec_mlp_forward.1} parent=1 // pred_check
      _
    $region27: #{dec_mlp_forward.1} parent=1 // pred_check_branch
      %70 = sbr.rel (0) target = $region29
    $region28: #{dec_mlp_forward.1} parent=1 // pred_region
      %72 = dma.done [#allocation5], 4096
    $region29: #{dec_mlp_forward.1} parent=1 // pred_fallthru
      _
    // Predicated region
    $region30: #{dec_mlp_forward.1} parent=1 // pred_check
      _
    $region31: #{dec_mlp_forward.1} parent=1 // pred_check_branch
      %74 = sbr.rel (0) target = $region33
    $region32: #{dec_mlp_forward.1} parent=1 // pred_region
      %76 = dma.done [#allocation5], 32
    $region33: #{dec_mlp_forward.1} parent=1 // pred_fallthru
      _
    // Predicated region
    $region34: #{dec_mlp_forward.1} parent=1 // pred_check
      _
    $region35: #{dec_mlp_forward.1} parent=1 // pred_check_branch
      %78 = sbr.rel (0) target = $region37
    $region36: #{dec_mlp_forward.1} parent=1 // pred_region
      %80 = dma.done [#allocation8], 2048
    $region37: #{dec_mlp_forward.1} parent=1 // pred_fallthru
      _
    %v81 = vld [vmem:[#allocation2] sm:$0xff]
    %v82 = vld [vmem:[#allocation2 + $0x8] sm:$0xff]
    %v83 = vld [vmem:[#allocation2 + $0x10] sm:$0xff]
    %v84 = vld [vmem:[#allocation2 + $0x18] sm:$0xff]
    %v85 = vpack.c.bf16 %v83, %v81
    %v86 = vpack.c.bf16 %v84, %v82
    %v87 = vld [vmem:[#allocation4] sm:$0xff]
    %v88 = vld [vmem:[#allocation4 + $0x8] sm:$0xff]
    %v89 = vld [vmem:[#allocation4 + $0x10] sm:$0xff]
    %v90 = vld [vmem:[#allocation4 + $0x18] sm:$0xff]
    %v91 = vld [vmem:[#allocation4 + $0x20] sm:$0xff]
    %v92 = vld [vmem:[#allocation4 + $0x28] sm:$0xff]
    %v93 = vld [vmem:[#allocation4 + $0x30] sm:$0xff]
    %v94 = vld [vmem:[#allocation4 + $0x38] sm:$0xff]
    %v95 = vld [vmem:[#allocation4 + $0x40] sm:$0xff]
    %v96 = vld [vmem:[#allocation4 + $0x48] sm:$0xff]
    %v97 = vld [vmem:[#allocation4 + $0x50] sm:$0xff]
    %v98 = vld [vmem:[#allocation4 + $0x58] sm:$0xff]
    %v99 = vld [vmem:[#allocation4 + $0x60] sm:$0xff]
    %v100 = vld [vmem:[#allocation4 + $0x68] sm:$0xff]
    %v101 = vld [vmem:[#allocation4 + $0x70] sm:$0xff]
    %v102 = vld [vmem:[#allocation4 + $0x78] sm:$0xff]
    %v103 = vld [vmem:[#allocation4 + $0x80] sm:$0xff]
    %v104 = vld [vmem:[#allocation4 + $0x88] sm:$0xff]
    %v105 = vld [vmem:[#allocation4 + $0x90] sm:$0xff]
    %v106 = vld [vmem:[#allocation4 + $0x98] sm:$0xff]
    %v107 = vld [vmem:[#allocation4 + $0xa0] sm:$0xff]
    %v108 = vld [vmem:[#allocation4 + $0xa8] sm:$0xff]
    %v109 = vld [vmem:[#allocation4 + $0xb0] sm:$0xff]
    %v110 = vld [vmem:[#allocation4 + $0xb8] sm:$0xff]
    %v111 = vld [vmem:[#allocation4 + $0xc0] sm:$0xff]
    %v112 = vld [vmem:[#allocation4 + $0xc8] sm:$0xff]
    %v113 = vld [vmem:[#allocation4 + $0xd0] sm:$0xff]
    %v114 = vld [vmem:[#allocation4 + $0xd8] sm:$0xff]
    %v115 = vld [vmem:[#allocation4 + $0xe0] sm:$0xff]
    %v116 = vld [vmem:[#allocation4 + $0xe8] sm:$0xff]
    %v117 = vld [vmem:[#allocation4 + $0xf0] sm:$0xff]
    %v118 = vld [vmem:[#allocation4 + $0xf8] sm:$0xff]
    %v119 = vld [vmem:[#allocation6] sm:$0x3]
    %v121 = vperm.slane %v119, 0
    %v122 = vperm.slane %v119, 1
    %v157 = vunpack.c.l.b16 %v87
    %v158 = vunpack.c.h.b16 %v87
    %v159 = vunpack.c.l.b16 %v88
    %v160 = vunpack.c.h.b16 %v88
    %v161 = vunpack.c.l.b16 %v89
    %v162 = vunpack.c.h.b16 %v89
    %v163 = vunpack.c.l.b16 %v90
    %v164 = vunpack.c.h.b16 %v90
    %v165 = vunpack.c.l.b16 %v91
    %v166 = vunpack.c.h.b16 %v91
    %v167 = vunpack.c.l.b16 %v92
    %v168 = vunpack.c.h.b16 %v92
    %v169 = vunpack.c.l.b16 %v93
    %v170 = vunpack.c.h.b16 %v93
    %v171 = vunpack.c.l.b16 %v94
    %v172 = vunpack.c.h.b16 %v94
    %v173 = vunpack.c.l.b16 %v95
    %v174 = vunpack.c.h.b16 %v95
    %v175 = vunpack.c.l.b16 %v96
    %v176 = vunpack.c.h.b16 %v96
    %v177 = vunpack.c.l.b16 %v97
    %v178 = vunpack.c.h.b16 %v97
    %v179 = vunpack.c.l.b16 %v98
    %v180 = vunpack.c.h.b16 %v98
    %v181 = vunpack.c.l.b16 %v99
    %v182 = vunpack.c.h.b16 %v99
    %v183 = vunpack.c.l.b16 %v100
    %v184 = vunpack.c.h.b16 %v100
    %v185 = vunpack.c.l.b16 %v101
    %v186 = vunpack.c.h.b16 %v101
    %v187 = vunpack.c.l.b16 %v102
    %v188 = vunpack.c.h.b16 %v102
    %v189 = vunpack.c.l.b16 %v103
    %v190 = vunpack.c.h.b16 %v103
    %v191 = vunpack.c.l.b16 %v104
    %v192 = vunpack.c.h.b16 %v104
    %v193 = vunpack.c.l.b16 %v105
    %v194 = vunpack.c.h.b16 %v105
    %v195 = vunpack.c.l.b16 %v106
    %v196 = vunpack.c.h.b16 %v106
    %v197 = vunpack.c.l.b16 %v107
    %v198 = vunpack.c.h.b16 %v107
    %v199 = vunpack.c.l.b16 %v108
    %v200 = vunpack.c.h.b16 %v108
    %v201 = vunpack.c.l.b16 %v109
    %v202 = vunpack.c.h.b16 %v109
    %v203 = vunpack.c.l.b16 %v110
    %v204 = vunpack.c.h.b16 %v110
    %v205 = vunpack.c.l.b16 %v111
    %v206 = vunpack.c.h.b16 %v111
    %v207 = vunpack.c.l.b16 %v112
    %v208 = vunpack.c.h.b16 %v112
    %v209 = vunpack.c.l.b16 %v113
    %v210 = vunpack.c.h.b16 %v113
    %v211 = vunpack.c.l.b16 %v114
    %v212 = vunpack.c.h.b16 %v114
    %v213 = vunpack.c.l.b16 %v115
    %v214 = vunpack.c.h.b16 %v115
    %v215 = vunpack.c.l.b16 %v116
    %v216 = vunpack.c.h.b16 %v116
    %v217 = vunpack.c.l.b16 %v117
    %v218 = vunpack.c.h.b16 %v117
    %v219 = vunpack.c.l.b16 %v118
    %v220 = vunpack.c.h.b16 %v118
    %v221 = vpack.c.b16 %v159, %v157
    %v222 = vpack.c.b16 %v160, %v158
    %v223 = vpack.c.b16 %v163, %v161
    %v224 = vpack.c.b16 %v164, %v162
    %v225 = vpack.c.b16 %v167, %v165
    %v226 = vpack.c.b16 %v168, %v166
    %v227 = vpack.c.b16 %v171, %v169
    %v228 = vpack.c.b16 %v172, %v170
    %v229 = vpack.c.b16 %v175, %v173
    %v230 = vpack.c.b16 %v176, %v174
    %v231 = vpack.c.b16 %v179, %v177
    %v232 = vpack.c.b16 %v180, %v178
    %v233 = vpack.c.b16 %v183, %v181
    %v234 = vpack.c.b16 %v184, %v182
    %v235 = vpack.c.b16 %v187, %v185
    %v236 = vpack.c.b16 %v188, %v186
    %v237 = vpack.c.b16 %v191, %v189
    %v238 = vpack.c.b16 %v192, %v190
    %v239 = vpack.c.b16 %v195, %v193
    %v240 = vpack.c.b16 %v196, %v194
    %v241 = vpack.c.b16 %v199, %v197
    %v242 = vpack.c.b16 %v200, %v198
    %v243 = vpack.c.b16 %v203, %v201
    %v244 = vpack.c.b16 %v204, %v202
    %v245 = vpack.c.b16 %v207, %v205
    %v246 = vpack.c.b16 %v208, %v206
    %v247 = vpack.c.b16 %v211, %v209
    %v248 = vpack.c.b16 %v212, %v210
    %v249 = vpack.c.b16 %v215, %v213
    %v250 = vpack.c.b16 %v216, %v214
    %v251 = vpack.c.b16 %v219, %v217
    %v252 = vpack.c.b16 %v220, %v218
    %285 = vmatpush.bf16.msra.mxu0 %v235
    %286 = vmatpush.bf16.msra.mxu0 %v233
    %287 = vmatpush.bf16.msra.mxu0 %v231
    %288 = vmatpush.bf16.msra.mxu0 %v229
    %289 = vmatpush.bf16.msra.mxu0 %v227
    %290 = vmatpush.bf16.msra.mxu0 %v225
    %291 = vmatpush.bf16.msra.mxu0 %v223
    %292 = vmatpush.bf16.msra.mxu0 %v221
    %293 = vmatmul.bf16.gmra.mxu0 %v85
    %v294 = vpop.f32.mrf.mxu0
    %v295 = vadd.f32 %v121, %v294
    %v296 = vpop.f32.mrf.mxu0
    %v297 = vadd.f32 %v121, %v296
    %298 = vdwg.mxu0
    %299 = vmatpush.bf16.msra.mxu0 %v251
    %300 = vmatpush.bf16.msra.mxu0 %v249
    %301 = vmatpush.bf16.msra.mxu0 %v247
    %302 = vmatpush.bf16.msra.mxu0 %v245
    %303 = vmatpush.bf16.msra.mxu0 %v243
    %304 = vmatpush.bf16.msra.mxu0 %v241
    %305 = vmatpush.bf16.msra.mxu0 %v239
    %306 = vmatpush.bf16.msra.mxu0 %v237
    %307 = vmatmul.bf16.gmra.mxu0 %v86
    %v308 = vpop.f32.mrf.mxu0
    %v309 = vadd.f32 %v295, %v308
    %v310 = vpop.f32.mrf.mxu0
    %v311 = vadd.f32 %v297, %v310
    %312 = vdwg.mxu0
    %313 = vmatpush.bf16.msra.mxu0 %v236
    %314 = vmatpush.bf16.msra.mxu0 %v234
    %315 = vmatpush.bf16.msra.mxu0 %v232
    %316 = vmatpush.bf16.msra.mxu0 %v230
    %317 = vmatpush.bf16.msra.mxu0 %v228
    %318 = vmatpush.bf16.msra.mxu0 %v226
    %319 = vmatpush.bf16.msra.mxu0 %v224
    %320 = vmatpush.bf16.msra.mxu0 %v222
    %321 = vmatmul.bf16.gmra.mxu0 %v85
    %v322 = vpop.f32.mrf.mxu0
    %v323 = vadd.f32 %v122, %v322
    %v324 = vpop.f32.mrf.mxu0
    %v325 = vadd.f32 %v122, %v324
    %326 = vdwg.mxu0
    %327 = vmatpush.bf16.msra.mxu0 %v252
    %328 = vmatpush.bf16.msra.mxu0 %v250
    %329 = vmatpush.bf16.msra.mxu0 %v248
    %330 = vmatpush.bf16.msra.mxu0 %v246
    %331 = vmatpush.bf16.msra.mxu0 %v244
    %332 = vmatpush.bf16.msra.mxu0 %v242
    %333 = vmatpush.bf16.msra.mxu0 %v240
    %334 = vmatpush.bf16.msra.mxu0 %v238
    %335 = vmatmul.bf16.gmra.mxu0 %v86
    %v336 = vpop.f32.mrf.mxu0
    %v337 = vadd.f32 %v323, %v336
    %v338 = vpop.f32.mrf.mxu0
    %v339 = vadd.f32 %v325, %v338
    %340 = vdwg.mxu0
    %v341 = vmax.f32 %v309, 0.0
    %v342 = vmax.f32 %v337, 0.0
    %v343 = vmax.f32 %v311, 0.0
    %v344 = vmax.f32 %v339, 0.0
    %v345 = vpack.c.bf16 %v343, %v341
    %v346 = vpack.c.bf16 %v344, %v342
    %v347 = vld [vmem:[#allocation7] sm:$0xf]
    %v348 = vld [vmem:[#allocation7 + $0x4] sm:$0xf]
    %v349 = vld [vmem:[#allocation7 + $0x8] sm:$0xf]
    %v350 = vld [vmem:[#allocation7 + $0xc] sm:$0xf]
    %v351 = vld [vmem:[#allocation7 + $0x10] sm:$0xf]
    %v352 = vld [vmem:[#allocation7 + $0x14] sm:$0xf]
    %v353 = vld [vmem:[#allocation7 + $0x18] sm:$0xf]
    %v354 = vld [vmem:[#allocation7 + $0x1c] sm:$0xf]
    %v355 = vld [vmem:[#allocation7 + $0x20] sm:$0xf]
    %v356 = vld [vmem:[#allocation7 + $0x24] sm:$0xf]
    %v357 = vld [vmem:[#allocation7 + $0x28] sm:$0xf]
    %v358 = vld [vmem:[#allocation7 + $0x2c] sm:$0xf]
    %v359 = vld [vmem:[#allocation7 + $0x30] sm:$0xf]
    %v360 = vld [vmem:[#allocation7 + $0x34] sm:$0xf]
    %v361 = vld [vmem:[#allocation7 + $0x38] sm:$0xf]
    %v362 = vld [vmem:[#allocation7 + $0x3c] sm:$0xf]
    %v363 = vld [vmem:[#allocation7 + $0x40] sm:$0xf]
    %v364 = vld [vmem:[#allocation7 + $0x44] sm:$0xf]
    %v365 = vld [vmem:[#allocation7 + $0x48] sm:$0xf]
    %v366 = vld [vmem:[#allocation7 + $0x4c] sm:$0xf]
    %v367 = vld [vmem:[#allocation7 + $0x50] sm:$0xf]
    %v368 = vld [vmem:[#allocation7 + $0x54] sm:$0xf]
    %v369 = vld [vmem:[#allocation7 + $0x58] sm:$0xf]
    %v370 = vld [vmem:[#allocation7 + $0x5c] sm:$0xf]
    %v371 = vld [vmem:[#allocation7 + $0x60] sm:$0xf]
    %v372 = vld [vmem:[#allocation7 + $0x64] sm:$0xf]
    %v373 = vld [vmem:[#allocation7 + $0x68] sm:$0xf]
    %v374 = vld [vmem:[#allocation7 + $0x6c] sm:$0xf]
    %v375 = vld [vmem:[#allocation7 + $0x70] sm:$0xf]
    %v376 = vld [vmem:[#allocation7 + $0x74] sm:$0xf]
    %v377 = vld [vmem:[#allocation7 + $0x78] sm:$0xf]
    %v378 = vld [vmem:[#allocation7 + $0x7c] sm:$0xf]
    %v379 = vld [vmem:[%s4] sm:$0x1]
    %v381 = vperm.slane %v379, 0
    %v415 = vunpack.c.l.b16 %v347
    %v416 = vunpack.c.l.b16 %v348
    %v417 = vunpack.c.l.b16 %v349
    %v418 = vunpack.c.l.b16 %v350
    %v419 = vunpack.c.l.b16 %v351
    %v420 = vunpack.c.l.b16 %v352
    %v421 = vunpack.c.l.b16 %v353
    %v422 = vunpack.c.l.b16 %v354
    %v423 = vunpack.c.l.b16 %v355
    %v424 = vunpack.c.l.b16 %v356
    %v425 = vunpack.c.l.b16 %v357
    %v426 = vunpack.c.l.b16 %v358
    %v427 = vunpack.c.l.b16 %v359
    %v428 = vunpack.c.l.b16 %v360
    %v429 = vunpack.c.l.b16 %v361
    %v430 = vunpack.c.l.b16 %v362
    %v431 = vunpack.c.l.b16 %v363
    %v432 = vunpack.c.l.b16 %v364
    %v433 = vunpack.c.l.b16 %v365
    %v434 = vunpack.c.l.b16 %v366
    %v435 = vunpack.c.l.b16 %v367
    %v436 = vunpack.c.l.b16 %v368
    %v437 = vunpack.c.l.b16 %v369
    %v438 = vunpack.c.l.b16 %v370
    %v439 = vunpack.c.l.b16 %v371
    %v440 = vunpack.c.l.b16 %v372
    %v441 = vunpack.c.l.b16 %v373
    %v442 = vunpack.c.l.b16 %v374
    %v443 = vunpack.c.l.b16 %v375
    %v444 = vunpack.c.l.b16 %v376
    %v445 = vunpack.c.l.b16 %v377
    %v446 = vunpack.c.l.b16 %v378
    %v447 = vpack.c.b16 %v416, %v415
    %v448 = vpack.c.b16 %v418, %v417
    %v449 = vpack.c.b16 %v420, %v419
    %v450 = vpack.c.b16 %v422, %v421
    %v451 = vpack.c.b16 %v424, %v423
    %v452 = vpack.c.b16 %v426, %v425
    %v453 = vpack.c.b16 %v428, %v427
    %v454 = vpack.c.b16 %v430, %v429
    %v455 = vpack.c.b16 %v432, %v431
    %v456 = vpack.c.b16 %v434, %v433
    %v457 = vpack.c.b16 %v436, %v435
    %v458 = vpack.c.b16 %v438, %v437
    %v459 = vpack.c.b16 %v440, %v439
    %v460 = vpack.c.b16 %v442, %v441
    %v461 = vpack.c.b16 %v444, %v443
    %v462 = vpack.c.b16 %v446, %v445
    %479 = vmatpush.bf16.msra.mxu0 %v454
    %480 = vmatpush.bf16.msra.mxu0 %v453
    %481 = vmatpush.bf16.msra.mxu0 %v452
    %482 = vmatpush.bf16.msra.mxu0 %v451
    %483 = vmatpush.bf16.msra.mxu0 %v450
    %484 = vmatpush.bf16.msra.mxu0 %v449
    %485 = vmatpush.bf16.msra.mxu0 %v448
    %486 = vmatpush.bf16.msra.mxu0 %v447
    %487 = vmatmul.bf16.gmra.mxu0 %v345
    %v488 = vpop.f32.mrf.mxu0
    %v489 = vadd.f32 %v381, %v488
    %v490 = vpop.f32.mrf.mxu0
    %v491 = vadd.f32 %v381, %v490
    %492 = vdwg.mxu0
    %493 = vmatpush.bf16.msra.mxu0 %v462
    %494 = vmatpush.bf16.msra.mxu0 %v461
    %495 = vmatpush.bf16.msra.mxu0 %v460
    %496 = vmatpush.bf16.msra.mxu0 %v459
    %497 = vmatpush.bf16.msra.mxu0 %v458
    %498 = vmatpush.bf16.msra.mxu0 %v457
    %499 = vmatpush.bf16.msra.mxu0 %v456
    %500 = vmatpush.bf16.msra.mxu0 %v455
    %501 = vmatmul.bf16.gmra.mxu0 %v346
    %v502 = vpop.f32.mrf.mxu0
    %v503 = vadd.f32 %v489, %v502
    %v504 = vpop.f32.mrf.mxu0
    %v505 = vadd.f32 %v491, %v504
    %506 = vdwg.mxu0
    %507 = vst [vmem:[%s5] sm:$0xff] %v503
    %508 = vst [vmem:[%s5 + $0x8] sm:$0xff] %v505
    // Predicated region
    $region38: #{dec_mlp_forward.1} parent=1 // pred_check
      _
    $region39: #{dec_mlp_forward.1} parent=1 // pred_check_branch
      %510 = sbr.rel (0) target = $region41
    $region40: #{dec_mlp_forward.1} parent=1 // pred_region
      _
    $region41: #{dec_mlp_forward.1} parent=1 // pred_fallthru
      _
    // Predicated region
    $region42: #{dec_mlp_forward.1} parent=1 // pred_check
      _
    $region43: #{dec_mlp_forward.1} parent=1 // pred_check_branch
      %512 = sbr.rel (0) target = $region45
    $region44: #{dec_mlp_forward.1} parent=1 // pred_region
      _
    $region45: #{dec_mlp_forward.1} parent=1 // pred_fallthru
      _
    %513 = vsyncpa [#allocation3], 1
    %514 = vsyncpa [#allocation5], 1
    %515 = vsyncpa [#allocation8], 1

// kernel: dec_mlp_forward.1
$region0: #{dec_mlp_forward.1}
  #allocation0 [shape = 'u32[]', space=smem, size = 0x4, offset = 0x4, fixed_abs, tag = 'smem constant byte address 0x4 - core index']
  #allocation1 [shape = 'u32[72,128]{1,0:T(1,128)}', space=vmem, size = 0x9000, scoped, tag = 'internal scratch']
  %s0 = inlined_call_operand.hbm [shape: f32[16,256], index: 0, kind: input, shape index: {}]
  %s1 = inlined_call_operand.hbm [shape: bf16[256,256], index: 1, kind: input, shape index: {}]
  %s2 = inlined_call_operand.hbm [shape: f32[1,256], index: 2, kind: input, shape index: {}]
  %s3 = inlined_call_operand.hbm [shape: bf16[256,128], index: 3, kind: input, shape index: {}]
  %s4 = inlined_call_operand.vmem [shape: f32[1,128], index: 4, kind: input, shape index: {}]
  %s5 = inlined_call_operand.vmem [shape: f32[16,128], index: 5, kind: output, shape index: {}]
  %s6 = sld [smem:[#allocation0]]
  $region46: #{dec_mlp_forward.1} parent=0
    _
  %s8 = ssub.s32 1, %s6
  %s9 = scalar_select 0, %s8, %s6
  $region1: #{dec_mlp_forward.1} parent=0
    #allocation2 [shape = 'u8[16384]{0}', space=vmem, size = 0x4000, scoped, tag = 'input window, operand 0, single buffered']
    #allocation3 [shape = 's32[1]{0}', space=sflag, size = 0x4, scoped, tag = 'scoped memory for dec_mlp_forward.1']
    #allocation4 [shape = 'u8[131072]{0}', space=vmem, size = 0x20000, scoped, tag = 'input window, operand 1, single buffered']
    #allocation5 [shape = 's32[1]{0}', space=sflag, size = 0x4, scoped, tag = 'scoped memory for dec_mlp_forward.1']
    #allocation6 [shape = 'u8[1024]{0}', space=vmem, size = 0x400, scoped, tag = 'input window, operand 2, single buffered']
    #allocation7 [shape = 'u8[65536]{0}', space=vmem, size = 0x10000, scoped, tag = 'input window, operand 3, single buffered']
    #allocation8 [shape = 's32[1]{0}', space=sflag, size = 0x4, scoped, tag = 'scoped memory for dec_mlp_forward.1']
    %10 = vsyncpa [#allocation3], 0
    %11 = vsyncpa [#allocation5], 0
    %12 = vsyncpa [#allocation8], 0
    // Predicated region
    $region2: #{dec_mlp_forward.1} parent=1 // pred_check
      _
    $region3: #{dec_mlp_forward.1} parent=1 // pred_check_branch
      %14 = sbr.rel (0) target = $region5
    $region4: #{dec_mlp_forward.1} parent=1 // pred_region
      %16 = vsyncadd [#allocation3], 0
      %s17 = sshll.u32 %s0, 4
      %s18 = int_to_ptr.hbm [resolvable:$true] %s17
      %s19 = sshll.u32 [#allocation2], 4
      %s20 = int_to_ptr.vmem [resolvable:$true] %s19
      %25 = dma.hbm_to_vmem [thread:$0]  %s18, 512, %s20, [#allocation3], 256, 256, 16
    $region5: #{dec_mlp_forward.1} parent=1 // pred_fallthru
      _
    // Predicated region
    $region6: #{dec_mlp_forward.1} parent=1 // pred_check
      _
    $region7: #{dec_mlp_forward.1} parent=1 // pred_check_branch
      %27 = sbr.rel (0) target = $region9
    $region8: #{dec_mlp_forward.1} parent=1 // pred_region
      %29 = vsyncadd [#allocation5], 0
      %s30 = sshll.u32 %s1, 4
      %s31 = int_to_ptr.hbm [resolvable:$true] %s30
      %s32 = sshll.u32 [#allocation4], 4
      %s33 = int_to_ptr.vmem [resolvable:$true] %s32
      %38 = dma.hbm_to_vmem [thread:$0]  %s31, 4096, %s33, [#allocation5], 128, 128, 8
    $region9: #{dec_mlp_forward.1} parent=1 // pred_fallthru
      _
    // Predicated region
    $region10: #{dec_mlp_forward.1} parent=1 // pred_check
      _
    $region11: #{dec_mlp_forward.1} parent=1 // pred_check_branch
      %40 = sbr.rel (0) target = $region13
    $region12: #{dec_mlp_forward.1} parent=1 // pred_region
      %42 = vsyncadd [#allocation5], 0
      %s44 = sshll.u32 %s2, 4
      %s45 = int_to_ptr.hbm [resolvable:$true] %s44
      %s46 = sshll.u32 [#allocation6], 4
      %s47 = int_to_ptr.vmem [resolvable:$true] %s46
      %49 = dma.hbm_to_vmem [thread:$0]  %s45, 32, %s47, [#allocation5]
    $region13: #{dec_mlp_forward.1} parent=1 // pred_fallthru
      _
    // Predicated region
    $region14: #{dec_mlp_forward.1} parent=1 // pred_check
      _
    $region15: #{dec_mlp_forward.1} parent=1 // pred_check_branch
      %51 = sbr.rel (0) target = $region17
    $region16: #{dec_mlp_forward.1} parent=1 // pred_region
      %53 = vsyncadd [#allocation8], 0
      %s54 = sshll.u32 %s3, 4
      %s55 = int_to_ptr.hbm [resolvable:$true] %s54
      %s56 = sshll.u32 [#allocation7], 4
      %s57 = int_to_ptr.vmem [resolvable:$true] %s56
      %62 = dma.hbm_to_vmem [thread:$0]  %s55, 2048, %s57, [#allocation8], 64, 64, 4
    $region17: #{dec_mlp_forward.1} parent=1 // pred_fallthru
      _
    // Predicated region
    $region18: #{dec_mlp_forward.1} parent=1 // pred_check
      _
    $region19: #{dec_mlp_forward.1} parent=1 // pred_check_branch
      %64 = sbr.rel (0) target = $region21
    $region20: #{dec_mlp_forward.1} parent=1 // pred_region
      _
    $region21: #{dec_mlp_forward.1} parent=1 // pred_fallthru
      _
    // Predicated region
    $region22: #{dec_mlp_forward.1} parent=1 // pred_check
      _
    $region23: #{dec_mlp_forward.1} parent=1 // pred_check_branch
      %66 = sbr.rel (0) target = $region25
    $region24: #{dec_mlp_forward.1} parent=1 // pred_region
      %68 = dma.done [#allocation3], 512
    $region25: #{dec_mlp_forward.1} parent=1 // pred_fallthru
      _
    // Predicated region
    $region26: #{dec_mlp_forward.1} parent=1 // pred_check
      _
    $region27: #{dec_mlp_forward.1} parent=1 // pred_check_branch
      %70 = sbr.rel (0) target = $region29
    $region28: #{dec_mlp_forward.1} parent=1 // pred_region
      %72 = dma.done [#allocation5], 4096
    $region29: #{dec_mlp_forward.1} parent=1 // pred_fallthru
      _
    // Predicated region
    $region30: #{dec_mlp_forward.1} parent=1 // pred_check
      _
    $region31: #{dec_mlp_forward.1} parent=1 // pred_check_branch
      %74 = sbr.rel (0) target = $region33
    $region32: #{dec_mlp_forward.1} parent=1 // pred_region
      %76 = dma.done [#allocation5], 32
    $region33: #{dec_mlp_forward.1} parent=1 // pred_fallthru
      _
    // Predicated region
    $region34: #{dec_mlp_forward.1} parent=1 // pred_check
      _
    $region35: #{dec_mlp_forward.1} parent=1 // pred_check_branch
      %78 = sbr.rel (0) target = $region37
    $region36: #{dec_mlp_forward.1} parent=1 // pred_region
      %80 = dma.done [#allocation8], 2048
    $region37: #{dec_mlp_forward.1} parent=1 // pred_fallthru
      _
    %v81 = vld [vmem:[#allocation2] sm:$0xff]
    %v82 = vld [vmem:[#allocation2 + $0x8] sm:$0xff]
    %v83 = vld [vmem:[#allocation2 + $0x10] sm:$0xff]
    %v84 = vld [vmem:[#allocation2 + $0x18] sm:$0xff]
    %v85 = vpack.c.bf16 %v83, %v81
    %v86 = vpack.c.bf16 %v84, %v82
    %v87 = vld [vmem:[#allocation4] sm:$0xff]
    %v88 = vld [vmem:[#allocation4 + $0x8] sm:$0xff]
    %v89 = vld [vmem:[#allocation4 + $0x10] sm:$0xff]
    %v90 = vld [vmem:[#allocation4 + $0x18] sm:$0xff]
    %v91 = vld [vmem:[#allocation4 + $0x20] sm:$0xff]
    %v92 = vld [vmem:[#allocation4 + $0x28] sm:$0xff]
    %v93 = vld [vmem:[#allocation4 + $0x30] sm:$0xff]
    %v94 = vld [vmem:[#allocation4 + $0x38] sm:$0xff]
    %v95 = vld [vmem:[#allocation4 + $0x40] sm:$0xff]
    %v96 = vld [vmem:[#allocation4 + $0x48] sm:$0xff]
    %v97 = vld [vmem:[#allocation4 + $0x50] sm:$0xff]
    %v98 = vld [vmem:[#allocation4 + $0x58] sm:$0xff]
    %v99 = vld [vmem:[#allocation4 + $0x60] sm:$0xff]
    %v100 = vld [vmem:[#allocation4 + $0x68] sm:$0xff]
    %v101 = vld [vmem:[#allocation4 + $0x70] sm:$0xff]
    %v102 = vld [vmem:[#allocation4 + $0x78] sm:$0xff]
    %v103 = vld [vmem:[#allocation4 + $0x80] sm:$0xff]
    %v104 = vld [vmem:[#allocation4 + $0x88] sm:$0xff]
    %v105 = vld [vmem:[#allocation4 + $0x90] sm:$0xff]
    %v106 = vld [vmem:[#allocation4 + $0x98] sm:$0xff]
    %v107 = vld [vmem:[#allocation4 + $0xa0] sm:$0xff]
    %v108 = vld [vmem:[#allocation4 + $0xa8] sm:$0xff]
    %v109 = vld [vmem:[#allocation4 + $0xb0] sm:$0xff]
    %v110 = vld [vmem:[#allocation4 + $0xb8] sm:$0xff]
    %v111 = vld [vmem:[#allocation4 + $0xc0] sm:$0xff]
    %v112 = vld [vmem:[#allocation4 + $0xc8] sm:$0xff]
    %v113 = vld [vmem:[#allocation4 + $0xd0] sm:$0xff]
    %v114 = vld [vmem:[#allocation4 + $0xd8] sm:$0xff]
    %v115 = vld [vmem:[#allocation4 + $0xe0] sm:$0xff]
    %v116 = vld [vmem:[#allocation4 + $0xe8] sm:$0xff]
    %v117 = vld [vmem:[#allocation4 + $0xf0] sm:$0xff]
    %v118 = vld [vmem:[#allocation4 + $0xf8] sm:$0xff]
    %v119 = vld [vmem:[#allocation6] sm:$0x3]
    %v121 = vperm.slane %v119, 0
    %v122 = vperm.slane %v119, 1
    %v157 = vunpack.c.l.b16 %v87
    %v158 = vunpack.c.h.b16 %v87
    %v159 = vunpack.c.l.b16 %v88
    %v160 = vunpack.c.h.b16 %v88
    %v161 = vunpack.c.l.b16 %v89
    %v162 = vunpack.c.h.b16 %v89
    %v163 = vunpack.c.l.b16 %v90
    %v164 = vunpack.c.h.b16 %v90
    %v165 = vunpack.c.l.b16 %v91
    %v166 = vunpack.c.h.b16 %v91
    %v167 = vunpack.c.l.b16 %v92
    %v168 = vunpack.c.h.b16 %v92
    %v169 = vunpack.c.l.b16 %v93
    %v170 = vunpack.c.h.b16 %v93
    %v171 = vunpack.c.l.b16 %v94
    %v172 = vunpack.c.h.b16 %v94
    %v173 = vunpack.c.l.b16 %v95
    %v174 = vunpack.c.h.b16 %v95
    %v175 = vunpack.c.l.b16 %v96
    %v176 = vunpack.c.h.b16 %v96
    %v177 = vunpack.c.l.b16 %v97
    %v178 = vunpack.c.h.b16 %v97
    %v179 = vunpack.c.l.b16 %v98
    %v180 = vunpack.c.h.b16 %v98
    %v181 = vunpack.c.l.b16 %v99
    %v182 = vunpack.c.h.b16 %v99
    %v183 = vunpack.c.l.b16 %v100
    %v184 = vunpack.c.h.b16 %v100
    %v185 = vunpack.c.l.b16 %v101
    %v186 = vunpack.c.h.b16 %v101
    %v187 = vunpack.c.l.b16 %v102
    %v188 = vunpack.c.h.b16 %v102
    %v189 = vunpack.c.l.b16 %v103
    %v190 = vunpack.c.h.b16 %v103
    %v191 = vunpack.c.l.b16 %v104
    %v192 = vunpack.c.h.b16 %v104
    %v193 = vunpack.c.l.b16 %v105
    %v194 = vunpack.c.h.b16 %v105
    %v195 = vunpack.c.l.b16 %v106
    %v196 = vunpack.c.h.b16 %v106
    %v197 = vunpack.c.l.b16 %v107
    %v198 = vunpack.c.h.b16 %v107
    %v199 = vunpack.c.l.b16 %v108
    %v200 = vunpack.c.h.b16 %v108
    %v201 = vunpack.c.l.b16 %v109
    %v202 = vunpack.c.h.b16 %v109
    %v203 = vunpack.c.l.b16 %v110
    %v204 = vunpack.c.h.b16 %v110
    %v205 = vunpack.c.l.b16 %v111
    %v206 = vunpack.c.h.b16 %v111
    %v207 = vunpack.c.l.b16 %v112
    %v208 = vunpack.c.h.b16 %v112
    %v209 = vunpack.c.l.b16 %v113
    %v210 = vunpack.c.h.b16 %v113
    %v211 = vunpack.c.l.b16 %v114
    %v212 = vunpack.c.h.b16 %v114
    %v213 = vunpack.c.l.b16 %v115
    %v214 = vunpack.c.h.b16 %v115
    %v215 = vunpack.c.l.b16 %v116
    %v216 = vunpack.c.h.b16 %v116
    %v217 = vunpack.c.l.b16 %v117
    %v218 = vunpack.c.h.b16 %v117
    %v219 = vunpack.c.l.b16 %v118
    %v220 = vunpack.c.h.b16 %v118
    %v221 = vpack.c.b16 %v159, %v157
    %v222 = vpack.c.b16 %v160, %v158
    %v223 = vpack.c.b16 %v163, %v161
    %v224 = vpack.c.b16 %v164, %v162
    %v225 = vpack.c.b16 %v167, %v165
    %v226 = vpack.c.b16 %v168, %v166
    %v227 = vpack.c.b16 %v171, %v169
    %v228 = vpack.c.b16 %v172, %v170
    %v229 = vpack.c.b16 %v175, %v173
    %v230 = vpack.c.b16 %v176, %v174
    %v231 = vpack.c.b16 %v179, %v177
    %v232 = vpack.c.b16 %v180, %v178
    %v233 = vpack.c.b16 %v183, %v181
    %v234 = vpack.c.b16 %v184, %v182
    %v235 = vpack.c.b16 %v187, %v185
    %v236 = vpack.c.b16 %v188, %v186
    %v237 = vpack.c.b16 %v191, %v189
    %v238 = vpack.c.b16 %v192, %v190
    %v239 = vpack.c.b16 %v195, %v193
    %v240 = vpack.c.b16 %v196, %v194
    %v241 = vpack.c.b16 %v199, %v197
    %v242 = vpack.c.b16 %v200, %v198
    %v243 = vpack.c.b16 %v203, %v201
    %v244 = vpack.c.b16 %v204, %v202
    %v245 = vpack.c.b16 %v207, %v205
    %v246 = vpack.c.b16 %v208, %v206
    %v247 = vpack.c.b16 %v211, %v209
    %v248 = vpack.c.b16 %v212, %v210
    %v249 = vpack.c.b16 %v215, %v213
    %v250 = vpack.c.b16 %v216, %v214
    %v251 = vpack.c.b16 %v219, %v217
    %v252 = vpack.c.b16 %v220, %v218
    %285 = vmatpush.bf16.msra.mxu0 %v235
    %286 = vmatpush.bf16.msra.mxu0 %v233
    %287 = vmatpush.bf16.msra.mxu0 %v231
    %288 = vmatpush.bf16.msra.mxu0 %v229
    %289 = vmatpush.bf16.msra.mxu0 %v227
    %290 = vmatpush.bf16.msra.mxu0 %v225
    %291 = vmatpush.bf16.msra.mxu0 %v223
    %292 = vmatpush.bf16.msra.mxu0 %v221
    %293 = vmatmul.bf16.gmra.mxu0 %v85
    %v294 = vpop.f32.mrf.mxu0
    %v295 = vadd.f32 %v121, %v294
    %v296 = vpop.f32.mrf.mxu0
    %v297 = vadd.f32 %v121, %v296
    %298 = vdwg.mxu0
    %299 = vmatpush.bf16.msra.mxu0 %v251
    %300 = vmatpush.bf16.msra.mxu0 %v249
    %301 = vmatpush.bf16.msra.mxu0 %v247
    %302 = vmatpush.bf16.msra.mxu0 %v245
    %303 = vmatpush.bf16.msra.mxu0 %v243
    %304 = vmatpush.bf16.msra.mxu0 %v241
    %305 = vmatpush.bf16.msra.mxu0 %v239
    %306 = vmatpush.bf16.msra.mxu0 %v237
    %307 = vmatmul.bf16.gmra.mxu0 %v86
    %v308 = vpop.f32.mrf.mxu0
    %v309 = vadd.f32 %v295, %v308
    %v310 = vpop.f32.mrf.mxu0
    %v311 = vadd.f32 %v297, %v310
    %312 = vdwg.mxu0
    %313 = vmatpush.bf16.msra.mxu0 %v236
    %314 = vmatpush.bf16.msra.mxu0 %v234
    %315 = vmatpush.bf16.msra.mxu0 %v232
    %316 = vmatpush.bf16.msra.mxu0 %v230
    %317 = vmatpush.bf16.msra.mxu0 %v228
    %318 = vmatpush.bf16.msra.mxu0 %v226
    %319 = vmatpush.bf16.msra.mxu0 %v224
    %320 = vmatpush.bf16.msra.mxu0 %v222
    %321 = vmatmul.bf16.gmra.mxu0 %v85
    %v322 = vpop.f32.mrf.mxu0
    %v323 = vadd.f32 %v122, %v322
    %v324 = vpop.f32.mrf.mxu0
    %v325 = vadd.f32 %v122, %v324
    %326 = vdwg.mxu0
    %327 = vmatpush.bf16.msra.mxu0 %v252
    %328 = vmatpush.bf16.msra.mxu0 %v250
    %329 = vmatpush.bf16.msra.mxu0 %v248
    %330 = vmatpush.bf16.msra.mxu0 %v246
    %331 = vmatpush.bf16.msra.mxu0 %v244
    %332 = vmatpush.bf16.msra.mxu0 %v242
    %333 = vmatpush.bf16.msra.mxu0 %v240
    %334 = vmatpush.bf16.msra.mxu0 %v238
    %335 = vmatmul.bf16.gmra.mxu0 %v86
    %v336 = vpop.f32.mrf.mxu0
    %v337 = vadd.f32 %v323, %v336
    %v338 = vpop.f32.mrf.mxu0
    %v339 = vadd.f32 %v325, %v338
    %340 = vdwg.mxu0
    %v341 = vmax.f32 %v309, 0.0
    %v342 = vmax.f32 %v337, 0.0
    %v343 = vmax.f32 %v311, 0.0
    %v344 = vmax.f32 %v339, 0.0
    %v345 = vpack.c.bf16 %v343, %v341
    %v346 = vpack.c.bf16 %v344, %v342
    %v347 = vld [vmem:[#allocation7] sm:$0xf]
    %v348 = vld [vmem:[#allocation7 + $0x4] sm:$0xf]
    %v349 = vld [vmem:[#allocation7 + $0x8] sm:$0xf]
    %v350 = vld [vmem:[#allocation7 + $0xc] sm:$0xf]
    %v351 = vld [vmem:[#allocation7 + $0x10] sm:$0xf]
    %v352 = vld [vmem:[#allocation7 + $0x14] sm:$0xf]
    %v353 = vld [vmem:[#allocation7 + $0x18] sm:$0xf]
    %v354 = vld [vmem:[#allocation7 + $0x1c] sm:$0xf]
    %v355 = vld [vmem:[#allocation7 + $0x20] sm:$0xf]
    %v356 = vld [vmem:[#allocation7 + $0x24] sm:$0xf]
    %v357 = vld [vmem:[#allocation7 + $0x28] sm:$0xf]
    %v358 = vld [vmem:[#allocation7 + $0x2c] sm:$0xf]
    %v359 = vld [vmem:[#allocation7 + $0x30] sm:$0xf]
    %v360 = vld [vmem:[#allocation7 + $0x34] sm:$0xf]
    %v361 = vld [vmem:[#allocation7 + $0x38] sm:$0xf]
    %v362 = vld [vmem:[#allocation7 + $0x3c] sm:$0xf]
    %v363 = vld [vmem:[#allocation7 + $0x40] sm:$0xf]
    %v364 = vld [vmem:[#allocation7 + $0x44] sm:$0xf]
    %v365 = vld [vmem:[#allocation7 + $0x48] sm:$0xf]
    %v366 = vld [vmem:[#allocation7 + $0x4c] sm:$0xf]
    %v367 = vld [vmem:[#allocation7 + $0x50] sm:$0xf]
    %v368 = vld [vmem:[#allocation7 + $0x54] sm:$0xf]
    %v369 = vld [vmem:[#allocation7 + $0x58] sm:$0xf]
    %v370 = vld [vmem:[#allocation7 + $0x5c] sm:$0xf]
    %v371 = vld [vmem:[#allocation7 + $0x60] sm:$0xf]
    %v372 = vld [vmem:[#allocation7 + $0x64] sm:$0xf]
    %v373 = vld [vmem:[#allocation7 + $0x68] sm:$0xf]
    %v374 = vld [vmem:[#allocation7 + $0x6c] sm:$0xf]
    %v375 = vld [vmem:[#allocation7 + $0x70] sm:$0xf]
    %v376 = vld [vmem:[#allocation7 + $0x74] sm:$0xf]
    %v377 = vld [vmem:[#allocation7 + $0x78] sm:$0xf]
    %v378 = vld [vmem:[#allocation7 + $0x7c] sm:$0xf]
    %v379 = vld [vmem:[%s4] sm:$0x1]
    %v381 = vperm.slane %v379, 0
    %v415 = vunpack.c.l.b16 %v347
    %v416 = vunpack.c.l.b16 %v348
    %v417 = vunpack.c.l.b16 %v349
    %v418 = vunpack.c.l.b16 %v350
    %v419 = vunpack.c.l.b16 %v351
    %v420 = vunpack.c.l.b16 %v352
    %v421 = vunpack.c.l.b16 %v353
    %v422 = vunpack.c.l.b16 %v354
    %v423 = vunpack.c.l.b16 %v355
    %v424 = vunpack.c.l.b16 %v356
    %v425 = vunpack.c.l.b16 %v357
    %v426 = vunpack.c.l.b16 %v358
    %v427 = vunpack.c.l.b16 %v359
    %v428 = vunpack.c.l.b16 %v360
    %v429 = vunpack.c.l.b16 %v361
    %v430 = vunpack.c.l.b16 %v362
    %v431 = vunpack.c.l.b16 %v363
    %v432 = vunpack.c.l.b16 %v364
    %v433 = vunpack.c.l.b16 %v365
    %v434 = vunpack.c.l.b16 %v366
    %v435 = vunpack.c.l.b16 %v367
    %v436 = vunpack.c.l.b16 %v368
    %v437 = vunpack.c.l.b16 %v369
    %v438 = vunpack.c.l.b16 %v370
    %v439 = vunpack.c.l.b16 %v371
    %v440 = vunpack.c.l.b16 %v372
    %v441 = vunpack.c.l.b16 %v373
    %v442 = vunpack.c.l.b16 %v374
    %v443 = vunpack.c.l.b16 %v375
    %v444 = vunpack.c.l.b16 %v376
    %v445 = vunpack.c.l.b16 %v377
    %v446 = vunpack.c.l.b16 %v378
    %v447 = vpack.c.b16 %v416, %v415
    %v448 = vpack.c.b16 %v418, %v417
    %v449 = vpack.c.b16 %v420, %v419
    %v450 = vpack.c.b16 %v422, %v421
    %v451 = vpack.c.b16 %v424, %v423
    %v452 = vpack.c.b16 %v426, %v425
    %v453 = vpack.c.b16 %v428, %v427
    %v454 = vpack.c.b16 %v430, %v429
    %v455 = vpack.c.b16 %v432, %v431
    %v456 = vpack.c.b16 %v434, %v433
    %v457 = vpack.c.b16 %v436, %v435
    %v458 = vpack.c.b16 %v438, %v437
    %v459 = vpack.c.b16 %v440, %v439
    %v460 = vpack.c.b16 %v442, %v441
    %v461 = vpack.c.b16 %v444, %v443
    %v462 = vpack.c.b16 %v446, %v445
    %479 = vmatpush.bf16.msra.mxu0 %v454
    %480 = vmatpush.bf16.msra.mxu0 %v453
    %481 = vmatpush.bf16.msra.mxu0 %v452
    %482 = vmatpush.bf16.msra.mxu0 %v451
    %483 = vmatpush.bf16.msra.mxu0 %v450
    %484 = vmatpush.bf16.msra.mxu0 %v449
    %485 = vmatpush.bf16.msra.mxu0 %v448
    %486 = vmatpush.bf16.msra.mxu0 %v447
    %487 = vmatmul.bf16.gmra.mxu0 %v345
    %v488 = vpop.f32.mrf.mxu0
    %v489 = vadd.f32 %v381, %v488
    %v490 = vpop.f32.mrf.mxu0
    %v491 = vadd.f32 %v381, %v490
    %492 = vdwg.mxu0
    %493 = vmatpush.bf16.msra.mxu0 %v462
    %494 = vmatpush.bf16.msra.mxu0 %v461
    %495 = vmatpush.bf16.msra.mxu0 %v460
    %496 = vmatpush.bf16.msra.mxu0 %v459
    %497 = vmatpush.bf16.msra.mxu0 %v458
    %498 = vmatpush.bf16.msra.mxu0 %v457
    %499 = vmatpush.bf16.msra.mxu0 %v456
    %500 = vmatpush.bf16.msra.mxu0 %v455
    %501 = vmatmul.bf16.gmra.mxu0 %v346
    %v502 = vpop.f32.mrf.mxu0
    %v503 = vadd.f32 %v489, %v502
    %v504 = vpop.f32.mrf.mxu0
    %v505 = vadd.f32 %v491, %v504
    %506 = vdwg.mxu0
    %507 = vst [vmem:[%s5] sm:$0xff] %v503
    %508 = vst [vmem:[%s5 + $0x8] sm:$0xff] %v505
    // Predicated region
    $region38: #{dec_mlp_forward.1} parent=1 // pred_check
      _
    $region39: #{dec_mlp_forward.1} parent=1 // pred_check_branch
      %510 = sbr.rel (0) target = $region41
    $region40: #{dec_mlp_forward.1} parent=1 // pred_region
      _
    $region41: #{dec_mlp_forward.1} parent=1 // pred_fallthru
      _
    // Predicated region
    $region42: #{dec_mlp_forward.1} parent=1 // pred_check
      _
    $region43: #{dec_mlp_forward.1} parent=1 // pred_check_branch
      %512 = sbr.rel (0) target = $region45
    $region44: #{dec_mlp_forward.1} parent=1 // pred_region
      _
    $region45: #{dec_mlp_forward.1} parent=1 // pred_fallthru
      _
    %513 = vsyncpa [#allocation3], 1
    %514 = vsyncpa [#allocation5], 1
    %515 = vsyncpa [#allocation8], 1

</llo_original>
